<compile_context>
chip_gen: v7x
topology: tpu7x:2x2x1
jax: 0.10.0
libtpu: 0.0.40
codegen_flags: <defaults>
</compile_context>

<pallas_src>
import jax
import jax.numpy as jnp
from jax.experimental import pallas as pl
from jax.experimental.pallas import tpu as pltpu


def _round_up(v, m):
    return ((v + m - 1) // m) * m


def node_block_kernel(dst_ref, x_ref, e_ref, wx_ref, we_ref, b_ref,
                      out_ref, agg_ref):
    i = pl.program_id(0)                  # node-tile index (parallel)
    k = pl.program_id(1)                  # edge-tile index (reduction, last)
    tile_n = agg_ref.shape[0]
    tile_e = dst_ref.shape[1]

    @pl.when(k == 0)
    def _():
        agg_ref[...] = jnp.zeros_like(agg_ref)

    # Per-tile one-hot incidence: R[r, c] = 1 iff edge c's dst == global node id
    # of local row r.  Global node id = i*tile_n + r.  Padded edges carry dst=-1
    # and therefore match nothing.
    row_ids = jax.lax.broadcasted_iota(jnp.int32, (tile_n, tile_e), 0) + i * tile_n
    recv = (row_ids == dst_ref[...]).astype(jnp.float32)          # (tile_n, tile_e)

    # Received-edge sum aggregation on the MXU for this edge tile.
    agg_ref[...] += jnp.dot(recv, e_ref[...],
                            preferred_element_type=jnp.float32)

    # Finalize once per node tile: Linear over concat([x, agg]) == x@Wx + agg@We + b.
    @pl.when(k == pl.num_programs(1) - 1)
    def _():
        h = jnp.dot(x_ref[...], wx_ref[...], preferred_element_type=jnp.float32)
        h = h + jnp.dot(agg_ref[...], we_ref[...],
                        preferred_element_type=jnp.float32)
        h = h + b_ref[...]
        out_ref[...] = h.astype(out_ref.dtype)


def node_block_forward(x, e, dst, wx, we, b, *, tile_n=256, tile_e=512):
    """x: [N, d_v] f32, e: [E, d_e] f32, dst: [E] int (receiver node per edge),
       wx: [d_v, out] f32, we: [d_e, out] f32, b: [out] f32  ->  h_v: [N, out] f32."""
    N, d_v = x.shape
    E, d_e = e.shape
    out_feats = wx.shape[1]

    # ---- tile / padding choices -------------------------------------------
    tile_n = min(tile_n, _round_up(N, 8))          # sublane-aligned node tile
    n_pad = _round_up(N, tile_n)
    tile_e = min(tile_e, _round_up(E, 128))        # lane-aligned edge tile
    e_pad = _round_up(E, tile_e)
    out_pad = _round_up(out_feats, 128)            # lane-dense output writes

    # ---- pad operands (pad rows/cols are zeros; pad edges get dst = -1) ----
    x_p = jnp.pad(x.astype(jnp.float32), ((0, n_pad - N), (0, 0)))
    e_p = jnp.pad(e.astype(jnp.float32), ((0, e_pad - E), (0, 0)))
    dst_p = jnp.pad(dst.astype(jnp.int32), (0, e_pad - E), constant_values=-1)
    dst2d = dst_p.reshape(1, e_pad)
    wx_p = jnp.pad(wx.astype(jnp.float32), ((0, 0), (0, out_pad - out_feats)))
    we_p = jnp.pad(we.astype(jnp.float32), ((0, 0), (0, out_pad - out_feats)))
    b_p = jnp.pad(b.astype(jnp.float32), (0, out_pad - out_feats)).reshape(1, out_pad)

    grid = (n_pad // tile_n, e_pad // tile_e)

    flops = 2 * n_pad * e_pad * d_e + 2 * n_pad * (d_v + d_e) * out_pad
    bytes_accessed = 4 * (n_pad * d_v + e_pad * d_e + e_pad
                          + (d_v + d_e) * out_pad + out_pad + n_pad * out_pad)

    out = pl.pallas_call(
        node_block_kernel,
        out_shape=jax.ShapeDtypeStruct((n_pad, out_pad), jnp.float32),
        grid_spec=pltpu.PrefetchScalarGridSpec(
            num_scalar_prefetch=0,
            grid=grid,
            in_specs=[
                pl.BlockSpec((1, tile_e), lambda i, k: (0, k)),        # dst tile
                pl.BlockSpec((tile_n, d_v), lambda i, k: (i, 0)),      # x tile
                pl.BlockSpec((tile_e, d_e), lambda i, k: (k, 0)),      # e tile
                pl.BlockSpec((d_v, out_pad), lambda i, k: (0, 0)),     # Wx
                pl.BlockSpec((d_e, out_pad), lambda i, k: (0, 0)),     # We
                pl.BlockSpec((1, out_pad), lambda i, k: (0, 0)),       # b
            ],
            out_specs=pl.BlockSpec((tile_n, out_pad), lambda i, k: (i, 0)),
            scratch_shapes=[pltpu.VMEM((tile_n, d_e), jnp.float32)],   # agg acc
        ),
        compiler_params=pltpu.CompilerParams(
            dimension_semantics=("parallel", "arbitrary"),
            vmem_limit_bytes=32 * 1024 * 1024,
        ),
        cost_estimate=pl.CostEstimate(
            flops=flops, transcendentals=0, bytes_accessed=bytes_accessed),
    )(dst2d, x_p, e_p, wx_p, we_p, b_p)

    return out[:N, :out_feats]


def node_block_reference(x, e, dst, wx, we, b):
    N = x.shape[0]
    agg = jax.ops.segment_sum(e, dst, num_segments=N)
    return x @ wx + agg @ we + b.reshape(1, -1)


def _run_case(key, N, E, d_v, d_e, out_feats):
    k_x, k_e, k_dst, k_w, k_b = jax.random.split(key, 5)
    in_feats = d_v + d_e
    x = jax.random.normal(k_x, (N, d_v), dtype=jnp.float32)
    e = jax.random.normal(k_e, (E, d_e), dtype=jnp.float32)
    dst = jax.random.randint(k_dst, (E,), 0, N, dtype=jnp.int32)
    # Deterministic nn.Linear-style init: U(-1/sqrt(in_feats), 1/sqrt(in_feats)).
    bound = 1.0 / jnp.sqrt(jnp.float32(in_feats))
    w = jax.random.uniform(k_w, (out_feats, in_feats), jnp.float32, -bound, bound)
    b = jax.random.uniform(k_b, (out_feats,), jnp.float32, -bound, bound)
    wx = w[:, :d_v].T          # [d_v, out_feats]
    we = w[:, d_v:].T          # [d_e, out_feats]

    h_v = node_block_forward(x, e, dst, wx, we, b)
    h_v = jax.block_until_ready(h_v)
    h_ref = node_block_reference(x, e, dst, wx, we, b)
    assert h_v.shape == (N, out_feats)
    assert bool(jnp.allclose(h_v, h_ref, atol=1e-4, rtol=1e-4)), "mismatch vs reference"


if __name__ == "__main__":
    key = jax.random.PRNGKey(0)
    k1, k2 = jax.random.split(key)

    # Small synthetic graph (matches module defaults: nodes + received-edge sum).
    _run_case(k1, N=8, E=16, d_v=8, d_e=8, out_feats=32)

    # Multi-tile case: exercises the node-parallel axis and the edge-reduction
    # accumulation across several grid steps.
    _run_case(k2, N=300, E=700, d_v=16, d_e=16, out_feats=48)

    print("KERNEL_OK")
</pallas_src>

<mosaic_0001>
module attributes {stable_mosaic.version = 11 : i64} {
  func.func @node_block_kernel(%arg0: i32, %arg1: i32, %arg2: memref<1x128xi32, #tpu.memory_space<vmem>>, %arg3: memref<8x8xf32, #tpu.memory_space<vmem>>, %arg4: memref<128x8xf32, #tpu.memory_space<vmem>>, %arg5: memref<8x128xf32, #tpu.memory_space<vmem>>, %arg6: memref<8x128xf32, #tpu.memory_space<vmem>>, %arg7: memref<1x128xf32, #tpu.memory_space<vmem>>, %arg8: memref<8x128xf32, #tpu.memory_space<vmem>>, %arg9: memref<8x8xf32, #tpu.memory_space<vmem>>) attributes {dimension_semantics = [#tpu.dimension_semantics<parallel>, #tpu.dimension_semantics<arbitrary>], iteration_bounds = array<i64: 1, 1>, scalar_prefetch = 0 : i64, scratch_operands = 1 : i64, tpu.core_type = #tpu.core_type<tc>, window_params = [{transform_indices = @transform_0, window_bounds = array<i64: 1, 128>}, {transform_indices = @transform_1, window_bounds = array<i64: 8, 8>}, {transform_indices = @transform_2, window_bounds = array<i64: 128, 8>}, {pipeline_mode = #tpu.pipeline_mode<synchronous>, transform_indices = @transform_3, window_bounds = array<i64: 8, 128>}, {pipeline_mode = #tpu.pipeline_mode<synchronous>, transform_indices = @transform_4, window_bounds = array<i64: 8, 128>}, {pipeline_mode = #tpu.pipeline_mode<synchronous>, transform_indices = @transform_5, window_bounds = array<i64: 1, 128>}, {transform_indices = @transform_6, window_bounds = array<i64: 8, 128>}]} {
    %c0_i32 = arith.constant 0 : i32
    %0 = arith.cmpi eq, %arg1, %c0_i32 : i32
    %1 = arith.extui %0 : i1 to i32
    %c0_i32_0 = arith.constant 0 : i32
    %2 = arith.cmpi ne, %1, %c0_i32_0 : i32
    scf.if %2 {
      %cst_10 = arith.constant 0.000000e+00 : f32
      %20 = vector.broadcast %cst_10 : f32 to vector<8x8xf32>
      %c0_11 = arith.constant 0 : index
      %c0_12 = arith.constant 0 : index
      %21 = vector.load %arg9[%c0_11, %c0_12] : memref<8x8xf32, #tpu.memory_space<vmem>>, vector<8x8xf32>
      tpu.vector_store %arg9[%c0_11, %c0_12], %20 {strides = array<i32>} : memref<8x8xf32, #tpu.memory_space<vmem>>, vector<8x8xf32>,
    } else {
    }
    %3 = tpu.iota {dimensions = array<i32: 0>} : vector<8x128xi32>
    %c8_i32 = arith.constant 8 : i32
    %4 = arith.muli %arg0, %c8_i32 : i32
    %5 = vector.broadcast %4 : i32 to vector<8x128xi32>
    %6 = arith.addi %3, %5 : vector<8x128xi32>
    %c0 = arith.constant 0 : index
    %c0_1 = arith.constant 0 : index
    %7 = vector.load %arg2[%c0, %c0_1] : memref<1x128xi32, #tpu.memory_space<vmem>>, vector<1x128xi32>
    %8 = vector.broadcast %7 : vector<1x128xi32> to vector<8x128xi32>
    %9 = arith.cmpi eq, %6, %8 : vector<8x128xi32>
    %10 = arith.extui %9 : vector<8x128xi1> to vector<8x128xi32>
    %11 = arith.sitofp %10 : vector<8x128xi32> to vector<8x128xf32>
    %c0_2 = arith.constant 0 : index
    %c0_3 = arith.constant 0 : index
    %12 = vector.load %arg9[%c0_2, %c0_3] : memref<8x8xf32, #tpu.memory_space<vmem>>, vector<8x8xf32>
    %c0_4 = arith.constant 0 : index
    %c0_5 = arith.constant 0 : index
    %13 = vector.load %arg4[%c0_4, %c0_5] : memref<128x8xf32, #tpu.memory_space<vmem>>, vector<128x8xf32>
    %cst = arith.constant dense<0.000000e+00> : vector<8x8xf32>
    %14 = tpu.matmul %11, %13, %cst {dimension_numbers = #tpu.dot_dimension_numbers<[1], [0], [0], [1], [0, 0, 1, 1], [], []>} : vector<8x128xf32>, vector<128x8xf32>, vector<8x8xf32> -> vector<8x8xf32>
    %15 = arith.addf %12, %14 : vector<8x8xf32>
    %c0_6 = arith.constant 0 : index
    %c0_7 = arith.constant 0 : index
    %16 = vector.load %arg9[%c0_6, %c0_7] : memref<8x8xf32, #tpu.memory_space<vmem>>, vector<8x8xf32>
    tpu.vector_store %arg9[%c0_6, %c0_7], %15 {strides = array<i32>} : memref<8x8xf32, #tpu.memory_space<vmem>>, vector<8x8xf32>,
    %c0_i32_8 = arith.constant 0 : i32
    %17 = arith.cmpi eq, %arg1, %c0_i32_8 : i32
    %18 = arith.extui %17 : i1 to i32
    %c0_i32_9 = arith.constant 0 : i32
    %19 = arith.cmpi ne, %18, %c0_i32_9 : i32
    scf.if %19 {
      %c0_10 = arith.constant 0 : index
      %c0_11 = arith.constant 0 : index
      %20 = vector.load %arg3[%c0_10, %c0_11] : memref<8x8xf32, #tpu.memory_space<vmem>>, vector<8x8xf32>
      %c0_12 = arith.constant 0 : index
      %c0_13 = arith.constant 0 : index
      %21 = vector.load %arg5[%c0_12, %c0_13] : memref<8x128xf32, #tpu.memory_space<vmem>>, vector<8x128xf32>
      %cst_14 = arith.constant dense<0.000000e+00> : vector<8x128xf32>
      %22 = tpu.matmul %20, %21, %cst_14 {dimension_numbers = #tpu.dot_dimension_numbers<[1], [0], [0], [1], [0, 0, 1, 1], [], []>} : vector<8x8xf32>, vector<8x128xf32>, vector<8x128xf32> -> vector<8x128xf32>
      %c0_15 = arith.constant 0 : index
      %c0_16 = arith.constant 0 : index
      %23 = vector.load %arg9[%c0_15, %c0_16] : memref<8x8xf32, #tpu.memory_space<vmem>>, vector<8x8xf32>
      %c0_17 = arith.constant 0 : index
      %c0_18 = arith.constant 0 : index
      %24 = vector.load %arg6[%c0_17, %c0_18] : memref<8x128xf32, #tpu.memory_space<vmem>>, vector<8x128xf32>
      %cst_19 = arith.constant dense<0.000000e+00> : vector<8x128xf32>
      %25 = tpu.matmul %23, %24, %cst_19 {dimension_numbers = #tpu.dot_dimension_numbers<[1], [0], [0], [1], [0, 0, 1, 1], [], []>} : vector<8x8xf32>, vector<8x128xf32>, vector<8x128xf32> -> vector<8x128xf32>
      %26 = arith.addf %22, %25 : vector<8x128xf32>
      %c0_20 = arith.constant 0 : index
      %c0_21 = arith.constant 0 : index
      %27 = vector.load %arg7[%c0_20, %c0_21] : memref<1x128xf32, #tpu.memory_space<vmem>>, vector<1x128xf32>
      %28 = vector.broadcast %27 : vector<1x128xf32> to vector<8x128xf32>
      %29 = arith.addf %26, %28 : vector<8x128xf32>
      %c0_22 = arith.constant 0 : index
      %c0_23 = arith.constant 0 : index
      %30 = vector.load %arg8[%c0_22, %c0_23] : memref<8x128xf32, #tpu.memory_space<vmem>>, vector<8x128xf32>
      tpu.vector_store %arg8[%c0_22, %c0_23], %29 {strides = array<i32>} : memref<8x128xf32, #tpu.memory_space<vmem>>, vector<8x128xf32>,
    } else {
    }
    return
  }
  func.func @transform_0(%arg0: i32, %arg1: i32) -> (i32, i32) {
    %c0_i32 = arith.constant 0 : i32
    %c0_i32_0 = arith.constant 0 : i32
    return %c0_i32, %arg1 : i32, i32
  }
  func.func @transform_1(%arg0: i32, %arg1: i32) -> (i32, i32) {
    %c0_i32 = arith.constant 0 : i32
    %c0_i32_0 = arith.constant 0 : i32
    return %arg0, %c0_i32 : i32, i32
  }
  func.func @transform_2(%arg0: i32, %arg1: i32) -> (i32, i32) {
    %c0_i32 = arith.constant 0 : i32
    %c0_i32_0 = arith.constant 0 : i32
    return %arg1, %c0_i32 : i32, i32
  }
  func.func @transform_3(%arg0: i32, %arg1: i32) -> (i32, i32) {
    %c0_i32 = arith.constant 0 : i32
    %c0_i32_0 = arith.constant 0 : i32
    %c0_i32_1 = arith.constant 0 : i32
    return %c0_i32, %c0_i32_0 : i32, i32
  }
  func.func @transform_4(%arg0: i32, %arg1: i32) -> (i32, i32) {
    %c0_i32 = arith.constant 0 : i32
    %c0_i32_0 = arith.constant 0 : i32
    %c0_i32_1 = arith.constant 0 : i32
    return %c0_i32, %c0_i32_0 : i32, i32
  }
  func.func @transform_5(%arg0: i32, %arg1: i32) -> (i32, i32) {
    %c0_i32 = arith.constant 0 : i32
    %c0_i32_0 = arith.constant 0 : i32
    %c0_i32_1 = arith.constant 0 : i32
    return %c0_i32, %c0_i32_0 : i32, i32
  }
  func.func @transform_6(%arg0: i32, %arg1: i32) -> (i32, i32) {
    %c0_i32 = arith.constant 0 : i32
    %c0_i32_0 = arith.constant 0 : i32
    return %arg0, %c0_i32 : i32, i32
  }
}

</mosaic_0001>

<llo_original>
// kernel: tpu_custom_call.1
$region0: #{tpu_custom_call.1}
  #allocation0 [shape = 'u32[]', space=smem, size = 0x4, offset = 0x4, fixed_abs, tag = 'smem constant byte address 0x4 - core index']
  #allocation1 [shape = 'u32[144,128]{1,0:T(1,128)}', space=vmem, size = 0x12000, scoped, tag = 'internal scratch']
  #allocation2 [shape = 'f32[8,8]{1,0:T(8,128)}', space=vmem, size = 0x1000, scoped, tag = 'scratch operand']
  %s0 = inlined_call_operand.vmem [shape: s32[1,128], index: 0, kind: input, shape index: {}]
  %s1 = inlined_call_operand.vmem [shape: f32[8,8], index: 1, kind: input, shape index: {}]
  %s2 = inlined_call_operand.vmem [shape: f32[128,8], index: 2, kind: input, shape index: {}]
  %s3 = inlined_call_operand.vmem [shape: f32[8,128], index: 3, kind: input, shape index: {}]
  %s4 = inlined_call_operand.vmem [shape: f32[8,128], index: 4, kind: input, shape index: {}]
  %s5 = inlined_call_operand.vmem [shape: f32[1,128], index: 5, kind: input, shape index: {}]
  %s6 = inlined_call_operand.hbm [shape: f32[8,128], index: 6, kind: output, shape index: {}]
  %s7 = sld [smem:[#allocation0]]
  $region42: #{tpu_custom_call.1} parent=0
    _
  %s9 = ssub.s32 1, %s7
  %s10 = scalar_select 0, %s9, %s7
  $region1: #{tpu_custom_call.1} parent=0
    #allocation3 [shape = 'u8[4096]{0}', space=vmem, size = 0x1000, scoped, tag = 'output window, operand 0, single buffered']
    #allocation4 [shape = 's32[1]{0}', space=sflag, size = 0x4, scoped, tag = 'scoped memory for tpu_custom_call.1']
    %11 = vsyncpa [#allocation4], 0
    // Predicated region
    $region2: #{tpu_custom_call.1} parent=1 // pred_check
      _
    $region3: #{tpu_custom_call.1} parent=1 // pred_check_branch
      %13 = sbr.rel (0) target = $region5
    $region4: #{tpu_custom_call.1} parent=1 // pred_region
      _
    $region5: #{tpu_custom_call.1} parent=1 // pred_fallthru
      _
    // Predicated region
    $region6: #{tpu_custom_call.1} parent=1 // pred_check
      _
    $region7: #{tpu_custom_call.1} parent=1 // pred_check_branch
      %15 = sbr.rel (0) target = $region9
    $region8: #{tpu_custom_call.1} parent=1 // pred_region
      _
    $region9: #{tpu_custom_call.1} parent=1 // pred_fallthru
      _
    // Predicated region
    $region10: #{tpu_custom_call.1} parent=1 // pred_check
      _
    $region11: #{tpu_custom_call.1} parent=1 // pred_check_branch
      %17 = sbr.rel (0) target = $region13
    $region12: #{tpu_custom_call.1} parent=1 // pred_region
      _
    $region13: #{tpu_custom_call.1} parent=1 // pred_fallthru
      _
    // Predicated region
    $region14: #{tpu_custom_call.1} parent=1 // pred_check
      _
    $region15: #{tpu_custom_call.1} parent=1 // pred_check_branch
      %19 = sbr.rel (0) target = $region17
    $region16: #{tpu_custom_call.1} parent=1 // pred_region
      _
    $region17: #{tpu_custom_call.1} parent=1 // pred_fallthru
      _
    // Predicated region
    $region18: #{tpu_custom_call.1} parent=1 // pred_check
      _
    $region19: #{tpu_custom_call.1} parent=1 // pred_check_branch
      %21 = sbr.rel (0) target = $region21
    $region20: #{tpu_custom_call.1} parent=1 // pred_region
      _
    $region21: #{tpu_custom_call.1} parent=1 // pred_fallthru
      _
    // Predicated region
    $region22: #{tpu_custom_call.1} parent=1 // pred_check
      _
    $region23: #{tpu_custom_call.1} parent=1 // pred_check_branch
      %23 = sbr.rel (0) target = $region25
    $region24: #{tpu_custom_call.1} parent=1 // pred_region
      _
    $region25: #{tpu_custom_call.1} parent=1 // pred_fallthru
      _
    %p24 = scmp.eq.s32.totalorder 0, 0
    // Predicated region
    $region26: #{tpu_custom_call.1} parent=1 // pred_check
      %p25 = pneg %p24
    $region27: #{tpu_custom_call.1} parent=1 // pred_check_branch
      %27 = sbr.rel (%p25) target = $region29
    $region28: #{tpu_custom_call.1} parent=1 // pred_region
      %vm28 = vcmask 64512
      %29 = vst.msk [vmem:[#allocation2] sm:$0xff] %vm28, 0.0
    $region29: #{tpu_custom_call.1} parent=1 // pred_fallthru
      _
    %v30 = vlaneseq
    %v31 = vshrl.u32 %v30, 7
    %s32 = smul.u32 0, 8
    %v33 = vstv %s32
    %v34 = vadd.s32 %v31, %v33
    %v35 = vld [vmem:[%s0] sm:$0x1]
    %v36 = vlaneseq
    %v37 = vshrl.u32 %v36, 7
    %v38 = vsub.s32 0, %v37
    %v39 = vrot.slane %v35, %v38
    %vm40 = vcmp.eq.s32.totalorder %v34, %v39
    %v41 = vsel %vm40, 1, 0
    %v42 = vcvt.s32.f32 %v41
    %v43 = vld [vmem:[#allocation2] sm:$0xff]
    %v44 = vld [vmem:[%s2] sm:$0xff]
    %v45 = vld [vmem:[%s2 + $0x8] sm:$0xff]
    %v46 = vld [vmem:[%s2 + $0x10] sm:$0xff]
    %v47 = vld [vmem:[%s2 + $0x18] sm:$0xff]
    %v48 = vld [vmem:[%s2 + $0x20] sm:$0xff]
    %v49 = vld [vmem:[%s2 + $0x28] sm:$0xff]
    %v50 = vld [vmem:[%s2 + $0x30] sm:$0xff]
    %v51 = vld [vmem:[%s2 + $0x38] sm:$0xff]
    %v52 = vld [vmem:[%s2 + $0x40] sm:$0xff]
    %v53 = vld [vmem:[%s2 + $0x48] sm:$0xff]
    %v54 = vld [vmem:[%s2 + $0x50] sm:$0xff]
    %v55 = vld [vmem:[%s2 + $0x58] sm:$0xff]
    %v56 = vld [vmem:[%s2 + $0x60] sm:$0xff]
    %v57 = vld [vmem:[%s2 + $0x68] sm:$0xff]
    %v58 = vld [vmem:[%s2 + $0x70] sm:$0xff]
    %v59 = vld [vmem:[%s2 + $0x78] sm:$0xff]
    %60 = vmatprep.subr.mxu0 0.0
    %61 = vmatpush1.msra.mxu0 %v44
    %62 = vmatprep.subr.mxu0 0.0
    %63 = vmatpush1.msra.mxu0 %v45
    %64 = vmatprep.subr.mxu0 0.0
    %65 = vmatpush1.msra.mxu0 %v46
    %66 = vmatprep.subr.mxu0 0.0
    %67 = vmatpush1.msra.mxu0 %v47
    %68 = vmatprep.subr.mxu0 0.0
    %69 = vmatpush1.msra.mxu0 %v48
    %70 = vmatprep.subr.mxu0 0.0
    %71 = vmatpush1.msra.mxu0 %v49
    %72 = vmatprep.subr.mxu0 0.0
    %73 = vmatpush1.msra.mxu0 %v50
    %74 = vmatprep.subr.mxu0 0.0
    %75 = vmatpush1.msra.mxu0 %v51
    %76 = vmatprep.subr.mxu0 0.0
    %77 = vmatpush1.msra.mxu0 %v52
    %78 = vmatprep.subr.mxu0 0.0
    %79 = vmatpush1.msra.mxu0 %v53
    %80 = vmatprep.subr.mxu0 0.0
    %81 = vmatpush1.msra.mxu0 %v54
    %82 = vmatprep.subr.mxu0 0.0
    %83 = vmatpush1.msra.mxu0 %v55
    %84 = vmatprep.subr.mxu0 0.0
    %85 = vmatpush1.msra.mxu0 %v56
    %86 = vmatprep.subr.mxu0 0.0
    %87 = vmatpush1.msra.mxu0 %v57
    %88 = vmatprep.subr.mxu0 0.0
    %89 = vmatpush1.msra.mxu0 %v58
    %90 = vmatprep.subr.mxu0 0.0
    %91 = vmatpush1.msra.mxu0 %v59
    %92 = vmatprep.subr.mxu0 0.0
    %93 = vmatpush1.msra.mxu0 0.0
    %94 = vmatprep.subr.mxu0 0.0
    %95 = vmatpush1.msra.mxu0 0.0
    %96 = vmatprep.subr.mxu0 0.0
    %97 = vmatpush1.msra.mxu0 0.0
    %98 = vmatprep.subr.mxu0 0.0
    %99 = vmatpush1.msra.mxu0 0.0
    %100 = vmatprep.subr.mxu0 0.0
    %101 = vmatpush1.msra.mxu0 0.0
    %102 = vmatprep.subr.mxu0 0.0
    %103 = vmatpush1.msra.mxu0 0.0
    %104 = vmatprep.subr.mxu0 0.0
    %105 = vmatpush1.msra.mxu0 0.0
    %106 = vmatprep.subr.mxu0 0.0
    %107 = vmatpush1.msra.mxu0 0.0
    %108 = vmatprep.subr.mxu0 0.0
    %109 = vmatpush1.msra.mxu0 0.0
    %110 = vmatprep.subr.mxu0 0.0
    %111 = vmatpush1.msra.mxu0 0.0
    %112 = vmatprep.subr.mxu0 0.0
    %113 = vmatpush1.msra.mxu0 0.0
    %114 = vmatprep.subr.mxu0 0.0
    %115 = vmatpush1.msra.mxu0 0.0
    %116 = vmatprep.subr.mxu0 0.0
    %117 = vmatpush1.msra.mxu0 0.0
    %118 = vmatprep.subr.mxu0 0.0
    %119 = vmatpush1.msra.mxu0 0.0
    %120 = vmatprep.subr.mxu0 0.0
    %121 = vmatpush1.msra.mxu0 0.0
    %122 = vmatprep.subr.mxu0 0.0
    %123 = vmatpush1.msra.mxu0 0.0
    %124 = vmatprep.mubr.f32.mxu0 0.0
    %125 = vmatmul.mubr.f32.gmra.mrb[0].mxu0 %v42
    %v126 = vpop.f32.mrb[0].mxu0
    %v127 = vadd.f32 0.0, %v126
    %v128 = vpop.f32.mrb[0].mxu0
    %129 = vdwg.mxu0
    %v130 = vadd.f32 %v43, %v127
    %vm131 = vcmask 64512
    %132 = vst.msk [vmem:[#allocation2] sm:$0xff] %vm131, %v130
    // Predicated region
    $region30: #{tpu_custom_call.1} parent=1 // pred_check
      %p133 = pneg %p24
    $region31: #{tpu_custom_call.1} parent=1 // pred_check_branch
      %135 = sbr.rel (%p133) target = $region33
    $region32: #{tpu_custom_call.1} parent=1 // pred_region
      %v136 = vld [vmem:[%s1] sm:$0xff]
      %v137 = vld [vmem:[%s3] sm:$0xff]
      %v138 = vld [vmem:[#allocation2] sm:$0xff]
      %v139 = vld [vmem:[%s4] sm:$0xff]
      %v141 = vsel %vm131, %v138, 0
      %143 = vmatprep.subr.mxu0 0.0
      %144 = vmatpush1.msra.mxu0 %v139
      %145 = vmatprep.subr.mxu0 0.0
      %146 = vmatpush1.msra.mxu0 0.0
      %147 = vmatprep.subr.mxu0 0.0
      %148 = vmatpush1.msra.mxu0 0.0
      %149 = vmatprep.subr.mxu0 0.0
      %150 = vmatpush1.msra.mxu0 0.0
      %151 = vmatprep.subr.mxu0 0.0
      %152 = vmatpush1.msra.mxu0 0.0
      %153 = vmatprep.subr.mxu0 0.0
      %154 = vmatpush1.msra.mxu0 0.0
      %155 = vmatprep.subr.mxu0 0.0
      %156 = vmatpush1.msra.mxu0 0.0
      %157 = vmatprep.subr.mxu0 0.0
      %158 = vmatpush1.msra.mxu0 0.0
      %159 = vmatprep.subr.mxu0 0.0
      %160 = vmatpush1.msra.mxu0 0.0
      %161 = vmatprep.subr.mxu0 0.0
      %162 = vmatpush1.msra.mxu0 0.0
      %163 = vmatprep.subr.mxu0 0.0
      %164 = vmatpush1.msra.mxu0 0.0
      %165 = vmatprep.subr.mxu0 0.0
      %166 = vmatpush1.msra.mxu0 0.0
      %167 = vmatprep.subr.mxu0 0.0
      %168 = vmatpush1.msra.mxu0 0.0
      %169 = vmatprep.subr.mxu0 0.0
      %170 = vmatpush1.msra.mxu0 0.0
      %171 = vmatprep.subr.mxu0 0.0
      %172 = vmatpush1.msra.mxu0 0.0
      %173 = vmatprep.subr.mxu0 0.0
      %174 = vmatpush1.msra.mxu0 0.0
      %175 = vmatprep.subr.mxu0 0.0
      %176 = vmatpush1.msra.mxu0 0.0
      %177 = vmatprep.subr.mxu0 0.0
      %178 = vmatpush1.msra.mxu0 0.0
      %179 = vmatprep.subr.mxu0 0.0
      %180 = vmatpush1.msra.mxu0 0.0
      %181 = vmatprep.subr.mxu0 0.0
      %182 = vmatpush1.msra.mxu0 0.0
      %183 = vmatprep.subr.mxu0 0.0
      %184 = vmatpush1.msra.mxu0 0.0
      %185 = vmatprep.subr.mxu0 0.0
      %186 = vmatpush1.msra.mxu0 0.0
      %187 = vmatprep.subr.mxu0 0.0
      %188 = vmatpush1.msra.mxu0 0.0
      %189 = vmatprep.subr.mxu0 0.0
      %190 = vmatpush1.msra.mxu0 0.0
      %191 = vmatprep.subr.mxu0 0.0
      %192 = vmatpush1.msra.mxu0 0.0
      %193 = vmatprep.subr.mxu0 0.0
      %194 = vmatpush1.msra.mxu0 0.0
      %195 = vmatprep.subr.mxu0 0.0
      %196 = vmatpush1.msra.mxu0 0.0
      %197 = vmatprep.subr.mxu0 0.0
      %198 = vmatpush1.msra.mxu0 0.0
      %199 = vmatprep.subr.mxu0 0.0
      %200 = vmatpush1.msra.mxu0 0.0
      %201 = vmatprep.subr.mxu0 0.0
      %202 = vmatpush1.msra.mxu0 0.0
      %203 = vmatprep.subr.mxu0 0.0
      %204 = vmatpush1.msra.mxu0 0.0
      %205 = vmatprep.subr.mxu0 0.0
      %206 = vmatpush1.msra.mxu0 0.0
      %207 = vmatprep.mubr.f32.mxu0 0.0
      %208 = vmatmul.mubr.f32.gmra.mrb[0].mxu0 %v141
      %v209 = vpop.f32.mrb[0].mxu0
      %v210 = vadd.f32 0.0, %v209
      %v211 = vpop.f32.mrb[0].mxu0
      %212 = vdwg.mxu0
      %v214 = vsel %vm131, %v136, 0
      %216 = vmatprep.subr.mxu0 0.0
      %217 = vmatpush1.msra.mxu0 %v137
      %218 = vmatprep.subr.mxu0 0.0
      %219 = vmatpush1.msra.mxu0 0.0
      %220 = vmatprep.subr.mxu0 0.0
      %221 = vmatpush1.msra.mxu0 0.0
      %222 = vmatprep.subr.mxu0 0.0
      %223 = vmatpush1.msra.mxu0 0.0
      %224 = vmatprep.subr.mxu0 0.0
      %225 = vmatpush1.msra.mxu0 0.0
      %226 = vmatprep.subr.mxu0 0.0
      %227 = vmatpush1.msra.mxu0 0.0
      %228 = vmatprep.subr.mxu0 0.0
      %229 = vmatpush1.msra.mxu0 0.0
      %230 = vmatprep.subr.mxu0 0.0
      %231 = vmatpush1.msra.mxu0 0.0
      %232 = vmatprep.subr.mxu0 0.0
      %233 = vmatpush1.msra.mxu0 0.0
      %234 = vmatprep.subr.mxu0 0.0
      %235 = vmatpush1.msra.mxu0 0.0
      %236 = vmatprep.subr.mxu0 0.0
      %237 = vmatpush1.msra.mxu0 0.0
      %238 = vmatprep.subr.mxu0 0.0
      %239 = vmatpush1.msra.mxu0 0.0
      %240 = vmatprep.subr.mxu0 0.0
      %241 = vmatpush1.msra.mxu0 0.0
      %242 = vmatprep.subr.mxu0 0.0
      %243 = vmatpush1.msra.mxu0 0.0
      %244 = vmatprep.subr.mxu0 0.0
      %245 = vmatpush1.msra.mxu0 0.0
      %246 = vmatprep.subr.mxu0 0.0
      %247 = vmatpush1.msra.mxu0 0.0
      %248 = vmatprep.subr.mxu0 0.0
      %249 = vmatpush1.msra.mxu0 0.0
      %250 = vmatprep.subr.mxu0 0.0
      %251 = vmatpush1.msra.mxu0 0.0
      %252 = vmatprep.subr.mxu0 0.0
      %253 = vmatpush1.msra.mxu0 0.0
      %254 = vmatprep.subr.mxu0 0.0
      %255 = vmatpush1.msra.mxu0 0.0
      %256 = vmatprep.subr.mxu0 0.0
      %257 = vmatpush1.msra.mxu0 0.0
      %258 = vmatprep.subr.mxu0 0.0
      %259 = vmatpush1.msra.mxu0 0.0
      %260 = vmatprep.subr.mxu0 0.0
      %261 = vmatpush1.msra.mxu0 0.0
      %262 = vmatprep.subr.mxu0 0.0
      %263 = vmatpush1.msra.mxu0 0.0
      %264 = vmatprep.subr.mxu0 0.0
      %265 = vmatpush1.msra.mxu0 0.0
      %266 = vmatprep.subr.mxu0 0.0
      %267 = vmatpush1.msra.mxu0 0.0
      %268 = vmatprep.subr.mxu0 0.0
      %269 = vmatpush1.msra.mxu0 0.0
      %270 = vmatprep.subr.mxu0 0.0
      %271 = vmatpush1.msra.mxu0 0.0
      %272 = vmatprep.subr.mxu0 0.0
      %273 = vmatpush1.msra.mxu0 0.0
      %274 = vmatprep.subr.mxu0 0.0
      %275 = vmatpush1.msra.mxu0 0.0
      %276 = vmatprep.subr.mxu0 0.0
      %277 = vmatpush1.msra.mxu0 0.0
      %278 = vmatprep.subr.mxu0 0.0
      %279 = vmatpush1.msra.mxu0 0.0
      %280 = vmatprep.mubr.f32.mxu0 0.0
      %281 = vmatmul.mubr.f32.gmra.mrb[0].mxu0 %v214
      %v282 = vpop.f32.mrb[0].mxu0
      %v283 = vadd.f32 %v210, %v282
      %v284 = vpop.f32.mrb[0].mxu0
      %285 = vdwg.mxu0
      %v286 = vld [vmem:[%s5] sm:$0x1]
      %v288 = vlaneseq
      %v289 = vshrl.u32 %v288, 7
      %v290 = vsub.s32 0, %v289
      %v291 = vrot.slane %v286, %v290
      %v293 = vadd.f32 %v283, %v291
      %294 = vst [vmem:[#allocation3] sm:$0xff] %v293
    $region33: #{tpu_custom_call.1} parent=1 // pred_fallthru
      _
    // Predicated region
    $region34: #{tpu_custom_call.1} parent=1 // pred_check
      _
    $region35: #{tpu_custom_call.1} parent=1 // pred_check_branch
      %296 = sbr.rel (0) target = $region37
    $region36: #{tpu_custom_call.1} parent=1 // pred_region
      %s298 = ssub.s32 128, 128
      %299 = vsyncadd [#allocation4], %s298
      %s301 = sshll.u32 [#allocation3], 4
      %s302 = int_to_ptr.vmem [resolvable:$true] %s301
      %304 = dma.vmem_to_hbm [thread:$0]  %s302, 128, %s6, [#allocation4]
    $region37: #{tpu_custom_call.1} parent=1 // pred_fallthru
      _
    // Predicated region
    $region38: #{tpu_custom_call.1} parent=1 // pred_check
      _
    $region39: #{tpu_custom_call.1} parent=1 // pred_check_branch
      %306 = sbr.rel (0) target = $region41
    $region40: #{tpu_custom_call.1} parent=1 // pred_region
      %307 = dma.done [#allocation4], 128
    $region41: #{tpu_custom_call.1} parent=1 // pred_fallthru
      _
    %308 = vsyncpa [#allocation4], 1

</llo_original>
